<compile_context>
chip_gen: v7x
topology: tpu7x:2x2x1
jax: 0.10.0
libtpu: 0.0.40
codegen_flags: <defaults>
</compile_context>

<pallas_src>
import jax
import jax.numpy as jnp
from jax.experimental import pallas as pl
from jax.experimental.pallas import tpu as pltpu

# ------------------------- model sizes (scaled-down, same structure) ---------
INPUT_DIM = 128
HIDDEN1 = 64
HIDDEN2 = 32
OUTPUT_DIM = 1
BN_EPS = 1e-5

# offsets inside the packed small-operand slab (row 0: biases, row 1: w3 row)
_B1_OFF = 0
_B2_OFF = HIDDEN1
_B3_OFF = HIDDEN1 + HIDDEN2          # 96 < 128
_SLAB_SHAPE = (2, 128)


def mil_kernel(x_ref, w1_ref, w2_ref, slab_ref, o_ref):
    # f32 -> bf16 cast in-kernel (hides under the MXU push, no wrapper convert)
    x = x_ref[...].astype(jnp.bfloat16)                    # (TB, 128)

    # static slices of the packed slab are free ref views
    b1 = slab_ref[0:1, _B1_OFF:_B1_OFF + HIDDEN1]          # (1, 64)  f32
    b2 = slab_ref[0:1, _B2_OFF:_B2_OFF + HIDDEN2]          # (1, 32)  f32
    b3 = slab_ref[0:1, _B3_OFF:_B3_OFF + 1]                # (1, 1)   f32
    w3_row = slab_ref[1:2, 0:HIDDEN2]                      # (1, 32)  f32

    # ---- layer 1: linear(+folded BN) -> relu  (dropout = identity) ----------
    h1 = jnp.dot(x, w1_ref[...], preferred_element_type=jnp.float32)
    h1 = jnp.maximum(h1 + b1, 0.0)                         # f32 (TB, 64)

    # ---- layer 2: linear(+folded BN) -> relu ---------------------------------
    h2 = jnp.dot(h1.astype(jnp.bfloat16), w2_ref[...],
                 preferred_element_type=jnp.float32)
    h2 = jnp.maximum(h2 + b2, 0.0)                         # f32 (TB, 32)

    # ---- layer 3: N=1 head on the VPU/XLU (mul + lane reduce), EUP sigmoid ---
    logits = jnp.sum(h2 * w3_row, axis=-1, keepdims=True) + b3   # (TB, 1)
    o_ref[...] = pl.reciprocal(1.0 + jnp.exp(-logits), approx=True)


def mil_forward(x, params, *, tb=256):
    """x: (B, INPUT_DIM) f32.  params = (w1 bf16, w2 bf16, slab f32)."""
    w1, w2, slab = params
    B = x.shape[0]
    num_tiles = pl.cdiv(B, tb)
    b_pad = num_tiles * tb
    if b_pad != B:
        x = jnp.pad(x, ((0, b_pad - B), (0, 0)))

    out = pl.pallas_call(
        mil_kernel,
        out_shape=jax.ShapeDtypeStruct((b_pad, OUTPUT_DIM), jnp.float32),
        grid=(num_tiles,),
        in_specs=[
            pl.BlockSpec((tb, INPUT_DIM), lambda i: (i, 0)),      # x tile (streams)
            pl.BlockSpec((INPUT_DIM, HIDDEN1), lambda i: (0, 0)),  # w1 (resident)
            pl.BlockSpec((HIDDEN1, HIDDEN2), lambda i: (0, 0)),    # w2 (resident)
            pl.BlockSpec(_SLAB_SHAPE, lambda i: (0, 0)),           # packed small ops
        ],
        out_specs=pl.BlockSpec((tb, OUTPUT_DIM), lambda i: (i, 0)),
        compiler_params=pltpu.CompilerParams(
            dimension_semantics=("parallel",)),                    # megacore on v7x
    )(x, w1, w2, slab)
    return out[:B]


# ------------------------------ parameter construction -----------------------
def xavier_normal(key, fan_in, fan_out):
    # matches nn.init.xavier_normal_ : std = sqrt(2 / (fan_in + fan_out))
    std = (2.0 / (fan_in + fan_out)) ** 0.5
    w = jax.random.normal(key, (fan_out, fan_in), dtype=jnp.float32) * std
    return w.T                                              # [in, out]


def init_raw_params(key):
    """Un-folded parameters (PyTorch-equivalent, eval-mode BN stats)."""
    k1, k2, k3 = jax.random.split(key, 3)
    w1 = xavier_normal(k1, INPUT_DIM, HIDDEN1)
    w2 = xavier_normal(k2, HIDDEN1, HIDDEN2)
    w3 = xavier_normal(k3, HIDDEN2, OUTPUT_DIM)
    b1 = jnp.zeros((1, HIDDEN1), jnp.float32)
    b2 = jnp.zeros((1, HIDDEN2), jnp.float32)
    b3 = jnp.zeros((1, OUTPUT_DIM), jnp.float32)

    # BatchNorm1d eval: gamma=1, beta=0, running_mean=0, running_var=1
    inv = 1.0 / jnp.sqrt(1.0 + BN_EPS)
    s1 = jnp.full((1, HIDDEN1), inv, jnp.float32)   # gamma / sqrt(var + eps)
    t1 = jnp.zeros((1, HIDDEN1), jnp.float32)       # beta - mean * scale
    s2 = jnp.full((1, HIDDEN2), inv, jnp.float32)
    t2 = jnp.zeros((1, HIDDEN2), jnp.float32)
    return (w1, b1, s1, t1, w2, b2, s2, t2, w3, b3)


def fold_params(raw):
    """Fold BN into linears, cast big mats to bf16, pack small f32 operands."""
    (w1, b1, s1, t1, w2, b2, s2, t2, w3, b3) = raw
    w1f = (w1 * s1).astype(jnp.bfloat16)             # [in, out] * [1, out]
    b1f = b1 * s1 + t1                               # f32 (1, 64)
    w2f = (w2 * s2).astype(jnp.bfloat16)
    b2f = b2 * s2 + t2                               # f32 (1, 32)
    w3_row = w3.T                                    # f32 (1, 32)

    slab = jnp.zeros(_SLAB_SHAPE, jnp.float32)
    slab = slab.at[0, _B1_OFF:_B1_OFF + HIDDEN1].set(b1f[0])
    slab = slab.at[0, _B2_OFF:_B2_OFF + HIDDEN2].set(b2f[0])
    slab = slab.at[0, _B3_OFF].set(b3[0, 0])
    slab = slab.at[1, 0:HIDDEN2].set(w3_row[0])
    return (w1f, w2f, slab)


def reference_forward(x, raw):
    """Pure-JAX f32 reference with explicit (un-folded) BN, eval semantics."""
    (w1, b1, s1, t1, w2, b2, s2, t2, w3, b3) = raw
    h1 = jnp.maximum((x @ w1 + b1) * s1 + t1, 0.0)
    h2 = jnp.maximum((h1 @ w2 + b2) * s2 + t2, 0.0)
    return jax.nn.sigmoid(h2 @ w3 + b3)


if __name__ == "__main__":
    key = jax.random.PRNGKey(0)
    kx, kp = jax.random.split(key)

    B = 512                                   # many 16-row bags per launch
    x = jax.random.normal(kx, (B, INPUT_DIM), dtype=jnp.float32)

    raw_params = init_raw_params(kp)
    kernel_params = fold_params(raw_params)

    out = mil_forward(x, kernel_params, tb=256)
    out = jax.block_until_ready(out)

    ref = reference_forward(x, raw_params)
    assert out.shape == (B, OUTPUT_DIM)
    # bf16 MXU operands (f32 accumulate) + approx-reciprocal sigmoid -> loose tol
    err = float(jnp.max(jnp.abs(out - ref)))
    assert jnp.allclose(out, ref, atol=2e-2, rtol=2e-2), f"max abs err {err}"

    print("KERNEL_OK")
</pallas_src>

<mosaic_0001>
module attributes {stable_mosaic.version = 11 : i64} {
  func.func @mil_kernel(%arg0: i32, %arg1: memref<256x128xf32, #tpu.memory_space<vmem>>, %arg2: memref<128x64xbf16, #tpu.memory_space<vmem>>, %arg3: memref<64x32xbf16, #tpu.memory_space<vmem>>, %arg4: memref<2x128xf32, #tpu.memory_space<vmem>>, %arg5: memref<256x1xf32, #tpu.memory_space<vmem>>) attributes {dimension_semantics = [#tpu.dimension_semantics<parallel>], iteration_bounds = array<i64: 2>, scalar_prefetch = 0 : i64, scratch_operands = 0 : i64, tpu.core_type = #tpu.core_type<tc>, window_params = [{transform_indices = @transform_0, window_bounds = array<i64: 256, 128>}, {pipeline_mode = #tpu.pipeline_mode<synchronous>, transform_indices = @transform_1, window_bounds = array<i64: 128, 64>}, {pipeline_mode = #tpu.pipeline_mode<synchronous>, transform_indices = @transform_2, window_bounds = array<i64: 64, 32>}, {pipeline_mode = #tpu.pipeline_mode<synchronous>, transform_indices = @transform_3, window_bounds = array<i64: 2, 128>}, {transform_indices = @transform_4, window_bounds = array<i64: 256, 1>}]} {
    %c0 = arith.constant 0 : index
    %c0_0 = arith.constant 0 : index
    %0 = vector.load %arg1[%c0, %c0_0] : memref<256x128xf32, #tpu.memory_space<vmem>>, vector<256x128xf32>
    %1 = arith.truncf %0 : vector<256x128xf32> to vector<256x128xbf16>
    %c0_1 = arith.constant 0 : index
    %c0_2 = arith.constant 0 : index
    %2 = vector.load %arg4[%c0_1, %c0_2] : memref<2x128xf32, #tpu.memory_space<vmem>>, vector<1x64xf32>
    %c0_3 = arith.constant 0 : index
    %c64 = arith.constant 64 : index
    %3 = vector.load %arg4[%c0_3, %c64] : memref<2x128xf32, #tpu.memory_space<vmem>>, vector<1x32xf32>
    %c0_4 = arith.constant 0 : index
    %c96 = arith.constant 96 : index
    %4 = vector.load %arg4[%c0_4, %c96] : memref<2x128xf32, #tpu.memory_space<vmem>>, vector<1x1xf32>
    %c1 = arith.constant 1 : index
    %c0_5 = arith.constant 0 : index
    %5 = vector.load %arg4[%c1, %c0_5] : memref<2x128xf32, #tpu.memory_space<vmem>>, vector<1x32xf32>
    %c0_6 = arith.constant 0 : index
    %c0_7 = arith.constant 0 : index
    %6 = vector.load %arg2[%c0_6, %c0_7] : memref<128x64xbf16, #tpu.memory_space<vmem>>, vector<128x64xbf16>
    %cst = arith.constant dense<0.000000e+00> : vector<256x64xf32>
    %7 = tpu.matmul %1, %6, %cst {dimension_numbers = #tpu.dot_dimension_numbers<[1], [0], [0], [1], [0, 0, 1, 1], [], []>} : vector<256x128xbf16>, vector<128x64xbf16>, vector<256x64xf32> -> vector<256x64xf32>
    %8 = vector.broadcast %2 : vector<1x64xf32> to vector<256x64xf32>
    %9 = arith.addf %7, %8 : vector<256x64xf32>
    %cst_8 = arith.constant 0.000000e+00 : f32
    %10 = vector.broadcast %cst_8 : f32 to vector<256x64xf32>
    %11 = arith.maximumf %9, %10 : vector<256x64xf32>
    %12 = arith.truncf %11 : vector<256x64xf32> to vector<256x64xbf16>
    %c0_9 = arith.constant 0 : index
    %c0_10 = arith.constant 0 : index
    %13 = vector.load %arg3[%c0_9, %c0_10] : memref<64x32xbf16, #tpu.memory_space<vmem>>, vector<64x32xbf16>
    %cst_11 = arith.constant dense<0.000000e+00> : vector<256x32xf32>
    %14 = tpu.matmul %12, %13, %cst_11 {dimension_numbers = #tpu.dot_dimension_numbers<[1], [0], [0], [1], [0, 0, 1, 1], [], []>} : vector<256x64xbf16>, vector<64x32xbf16>, vector<256x32xf32> -> vector<256x32xf32>
    %15 = vector.broadcast %3 : vector<1x32xf32> to vector<256x32xf32>
    %16 = arith.addf %14, %15 : vector<256x32xf32>
    %cst_12 = arith.constant 0.000000e+00 : f32
    %17 = vector.broadcast %cst_12 : f32 to vector<256x32xf32>
    %18 = arith.maximumf %16, %17 : vector<256x32xf32>
    %19 = vector.broadcast %5 : vector<1x32xf32> to vector<256x32xf32>
    %20 = arith.mulf %18, %19 : vector<256x32xf32>
    %cst_13 = arith.constant dense<0.000000e+00> : vector<256xf32>
    %21 = vector.multi_reduction <add>, %20, %cst_13 [1] : vector<256x32xf32> to vector<256xf32>
    %22 = vector.shape_cast %21 : vector<256xf32> to vector<256x1xf32>
    %23 = vector.broadcast %4 : vector<1x1xf32> to vector<256x1xf32>
    %24 = arith.addf %22, %23 : vector<256x1xf32>
    %cst_14 = arith.constant 0.000000e+00 : f32
    %25 = vector.broadcast %cst_14 : f32 to vector<256x1xf32>
    %26 = arith.subf %25, %24 : vector<256x1xf32>
    %27 = math.exp %26 : vector<256x1xf32>
    %cst_15 = arith.constant 1.000000e+00 : f32
    %28 = vector.broadcast %cst_15 : f32 to vector<256x1xf32>
    %29 = arith.addf %28, %27 : vector<256x1xf32>
    %30 = tpu.reciprocal %29 {approx = true} : vector<256x1xf32> -> vector<256x1xf32>
    %c0_16 = arith.constant 0 : index
    %c0_17 = arith.constant 0 : index
    %31 = vector.load %arg5[%c0_16, %c0_17] : memref<256x1xf32, #tpu.memory_space<vmem>>, vector<256x1xf32>
    tpu.vector_store %arg5[%c0_16, %c0_17], %30 {strides = array<i32>} : memref<256x1xf32, #tpu.memory_space<vmem>>, vector<256x1xf32>,
    return
  }
  func.func @transform_0(%arg0: i32) -> (i32, i32) {
    %c0_i32 = arith.constant 0 : i32
    %c0_i32_0 = arith.constant 0 : i32
    return %arg0, %c0_i32 : i32, i32
  }
  func.func @transform_1(%arg0: i32) -> (i32, i32) {
    %c0_i32 = arith.constant 0 : i32
    %c0_i32_0 = arith.constant 0 : i32
    %c0_i32_1 = arith.constant 0 : i32
    return %c0_i32, %c0_i32_0 : i32, i32
  }
  func.func @transform_2(%arg0: i32) -> (i32, i32) {
    %c0_i32 = arith.constant 0 : i32
    %c0_i32_0 = arith.constant 0 : i32
    %c0_i32_1 = arith.constant 0 : i32
    return %c0_i32, %c0_i32_0 : i32, i32
  }
  func.func @transform_3(%arg0: i32) -> (i32, i32) {
    %c0_i32 = arith.constant 0 : i32
    %c0_i32_0 = arith.constant 0 : i32
    %c0_i32_1 = arith.constant 0 : i32
    return %c0_i32, %c0_i32_0 : i32, i32
  }
  func.func @transform_4(%arg0: i32) -> (i32, i32) {
    %c0_i32 = arith.constant 0 : i32
    %c0_i32_0 = arith.constant 0 : i32
    return %arg0, %c0_i32 : i32, i32
  }
}

</mosaic_0001>

<llo_original>
// kernel: tpu_custom_call.1
$region0: #{tpu_custom_call.1}
  #allocation0 [shape = 'u32[]', space=smem, size = 0x4, offset = 0x4, fixed_abs, tag = 'smem constant byte address 0x4 - core index']
  #allocation1 [shape = 'u32[144,128]{1,0:T(1,128)}', space=vmem, size = 0x12000, scoped, tag = 'internal scratch']
  %s0 = inlined_call_operand.hbm [shape: f32[512,128], index: 0, kind: input, shape index: {}]
  %s1 = inlined_call_operand.vmem [shape: bf16[128,64], index: 1, kind: input, shape index: {}]
  %s2 = inlined_call_operand.vmem [shape: bf16[64,32], index: 2, kind: input, shape index: {}]
  %s3 = inlined_call_operand.vmem [shape: f32[2,128], index: 3, kind: input, shape index: {}]
  %s4 = inlined_call_operand.vmem [shape: f32[512,1], index: 4, kind: output, shape index: {}]
  %s5 = sld [smem:[#allocation0]]
  $region53: #{tpu_custom_call.1} parent=0
    _
  %s7 = ssub.s32 1, %s5
  %s8 = scalar_select 0, %s7, %s5
  $region1: #{tpu_custom_call.1} parent=0
    #allocation2 [shape = 'u8[262144]{0}', space=vmem, size = 0x40000, scoped, tag = 'input window, operand 0']
    #allocation3 [shape = 's32[2]{0}', space=sflag, size = 0x8, scoped, tag = 'scoped memory for tpu_custom_call.1']
    %9 = vsyncpa [#allocation3], 0
    %s10 = scalar_lea.sflag [#allocation3], 1
    %11 = vsyncpa %s10, 0
    loop: start=0, step=1, limit=4
    $region2: #{tpu_custom_call.1} parent=1 // loop_pre_header
      _
    $region3: #{tpu_custom_call.1} parent=1 // loop_header
      %s13 = sphi 0, %s17
      %p14 = scmp.ge.s32.totalorder %s13, 4
      %s23 = sphi 0, %s25
      %s26 = sphi 0, %s23
      %s27 = sphi 0, %s26
      %s43 = sphi 0, %s27
      %s47 = sphi 0, %s47
      %s49 = sphi 0, %s47
      %s50 = sphi 0, %s49
      %s64 = sphi 0, %s50
      %s68 = sphi 0, %s68
      %s70 = sphi 0, %s68
      %s71 = sphi 0, %s70
      %s85 = sphi 0, %s71
      %s89 = sphi 0, %s89
      %s91 = sphi 0, %s89
      %s92 = sphi 0, %s91
      %s106 = sphi 0, %s92
      %s112 = sphi 0, %s114
      %s115 = sphi 0, %s112
      %s116 = sphi 0, %s115
      %s132 = sphi 0, %s116
    $region4: #{tpu_custom_call.1} parent=1 // loop_header_branch
      %16 = sbr.rel (%p14) target = $region8
    $region5: #{tpu_custom_call.1} parent=1 // loop_body
      %s18 = ssub.s32 %s13, 1
      %s19 = ssub.s32 %s13, 2
      %s20 = sadd.s32 %s13, 1
      %s21 = ssub.s32 %s13, %s20
      %p22 = scmp.eq.s32.totalorder %s21, 0
      %s24 = sadd.s32 %s23, 1
      %s25 = scalar_select %p22, %s23, %s24
      %p28 = pneg %p22
      %p29 = scmp.eq.s32.totalorder %s13, 1
      %p30 = por %p28, %p29
      %p31 = scmp.ne.s32.totalorder %s23, %s26
      %p32 = scmp.eq.s32.totalorder %s13, 0
      %p33 = por %p31, %p32
      %p34 = scmp.ne.s32.totalorder %s23, %s26
      %p35 = scmp.eq.s32.totalorder %s18, 1
      %p36 = por %p34, %p35
      %p37 = scmp.ne.s32.totalorder %s26, %s27
      %p38 = scmp.eq.s32.totalorder %s18, 0
      %p39 = por %p37, %p38
      %p40 = scmp.ne.s32.totalorder %s26, %s27
      %p41 = scmp.eq.s32.totalorder %s19, 1
      %p42 = por %p40, %p41
      %p44 = scmp.ne.s32.totalorder %s27, %s43
      %p45 = scmp.eq.s32.totalorder %s19, 0
      %p46 = por %p44, %p45
      %s48 = sadd.s32 %s47, 1
      %p51 = scmp.eq.s32.totalorder %s13, 1
      %p52 = scmp.ne.s32.totalorder %s47, %s49
      %p53 = scmp.eq.s32.totalorder %s13, 0
      %p54 = por %p52, %p53
      %p55 = scmp.ne.s32.totalorder %s47, %s49
      %p56 = scmp.eq.s32.totalorder %s18, 1
      %p57 = por %p55, %p56
      %p58 = scmp.ne.s32.totalorder %s49, %s50
      %p59 = scmp.eq.s32.totalorder %s18, 0
      %p60 = por %p58, %p59
      %p61 = scmp.ne.s32.totalorder %s49, %s50
      %p62 = scmp.eq.s32.totalorder %s19, 1
      %p63 = por %p61, %p62
      %p65 = scmp.ne.s32.totalorder %s50, %s64
      %p66 = scmp.eq.s32.totalorder %s19, 0
      %p67 = por %p65, %p66
      %s69 = sadd.s32 %s68, 1
      %p72 = scmp.eq.s32.totalorder %s13, 1
      %p73 = scmp.ne.s32.totalorder %s68, %s70
      %p74 = scmp.eq.s32.totalorder %s13, 0
      %p75 = por %p73, %p74
      %p76 = scmp.ne.s32.totalorder %s68, %s70
      %p77 = scmp.eq.s32.totalorder %s18, 1
      %p78 = por %p76, %p77
      %p79 = scmp.ne.s32.totalorder %s70, %s71
      %p80 = scmp.eq.s32.totalorder %s18, 0
      %p81 = por %p79, %p80
      %p82 = scmp.ne.s32.totalorder %s70, %s71
      %p83 = scmp.eq.s32.totalorder %s19, 1
      %p84 = por %p82, %p83
      %p86 = scmp.ne.s32.totalorder %s71, %s85
      %p87 = scmp.eq.s32.totalorder %s19, 0
      %p88 = por %p86, %p87
      %s90 = sadd.s32 %s89, 1
      %p93 = scmp.eq.s32.totalorder %s13, 1
      %p94 = scmp.ne.s32.totalorder %s89, %s91
      %p95 = scmp.eq.s32.totalorder %s13, 0
      %p96 = por %p94, %p95
      %p97 = scmp.ne.s32.totalorder %s89, %s91
      %p98 = scmp.eq.s32.totalorder %s18, 1
      %p99 = por %p97, %p98
      %p100 = scmp.ne.s32.totalorder %s91, %s92
      %p101 = scmp.eq.s32.totalorder %s18, 0
      %p102 = por %p100, %p101
      %p103 = scmp.ne.s32.totalorder %s91, %s92
      %p104 = scmp.eq.s32.totalorder %s19, 1
      %p105 = por %p103, %p104
      %p107 = scmp.ne.s32.totalorder %s92, %s106
      %p108 = scmp.eq.s32.totalorder %s19, 0
      %p109 = por %p107, %p108
      %s110 = ssub.s32 %s13, %s20
      %p111 = scmp.eq.s32.totalorder %s110, 0
      %s113 = sadd.s32 %s112, 1
      %s114 = scalar_select %p111, %s112, %s113
      %p117 = pneg %p111
      %p118 = scmp.eq.s32.totalorder %s13, 1
      %p119 = por %p117, %p118
      %p120 = scmp.ne.s32.totalorder %s112, %s115
      %p121 = scmp.eq.s32.totalorder %s13, 0
      %p122 = por %p120, %p121
      %p123 = scmp.ne.s32.totalorder %s112, %s115
      %p124 = scmp.eq.s32.totalorder %s18, 1
      %p125 = por %p123, %p124
      %p126 = scmp.ne.s32.totalorder %s115, %s116
      %p127 = scmp.eq.s32.totalorder %s18, 0
      %p128 = por %p126, %p127
      %p129 = scmp.ne.s32.totalorder %s115, %s116
      %p130 = scmp.eq.s32.totalorder %s19, 1
      %p131 = por %p129, %p130
      %p133 = scmp.ne.s32.totalorder %s116, %s132
      %p134 = scmp.eq.s32.totalorder %s19, 0
      %p135 = por %p133, %p134
      %p136 = scmp.le.s32.totalorder 1, %s13
      %p137 = scmp.lt.s32.totalorder %s13, 3
      %p138 = pnand %p136, %p137
      %p139 = pneg %p138
      // Predicated region
      $region9: #{tpu_custom_call.1} parent=5 // pred_check
        _
      $region10: #{tpu_custom_call.1} parent=5 // pred_check_branch
        %141 = sbr.rel (%p138) target = $region12
      $region11: #{tpu_custom_call.1} parent=5 // pred_region
        %s142 = ssub.s32 %s13, 1
        // Predicated region
        $region13: #{tpu_custom_call.1} parent=11 // pred_check
          %p143 = pneg %p60
        $region14: #{tpu_custom_call.1} parent=11 // pred_check_branch
          %145 = sbr.rel (%p143) target = $region16
        $region15: #{tpu_custom_call.1} parent=11 // pred_region
          _
        $region16: #{tpu_custom_call.1} parent=11 // pred_fallthru
          _
        // Predicated region
        $region17: #{tpu_custom_call.1} parent=11 // pred_check
          %p146 = pneg %p81
        $region18: #{tpu_custom_call.1} parent=11 // pred_check_branch
          %148 = sbr.rel (%p146) target = $region20
        $region19: #{tpu_custom_call.1} parent=11 // pred_region
          _
        $region20: #{tpu_custom_call.1} parent=11 // pred_fallthru
          _
        // Predicated region
        $region21: #{tpu_custom_call.1} parent=11 // pred_check
          %p149 = pneg %p102
        $region22: #{tpu_custom_call.1} parent=11 // pred_check_branch
          %151 = sbr.rel (%p149) target = $region24
        $region23: #{tpu_custom_call.1} parent=11 // pred_region
          _
        $region24: #{tpu_custom_call.1} parent=11 // pred_fallthru
          _
      $region12: #{tpu_custom_call.1} parent=5 // pred_fallthru
        _
      %p152 = scmp.lt.s32.totalorder %s13, 2
      // Predicated region
      $region25: #{tpu_custom_call.1} parent=5 // pred_check
        %p153 = pneg %p152
      $region26: #{tpu_custom_call.1} parent=5 // pred_check_branch
        %155 = sbr.rel (%p153) target = $region28
      $region27: #{tpu_custom_call.1} parent=5 // pred_region
        // Predicated region
        $region29: #{tpu_custom_call.1} parent=27 // pred_check
          %p156 = pneg %p33
        $region30: #{tpu_custom_call.1} parent=27 // pred_check_branch
          %158 = sbr.rel (%p156) target = $region32
        $region31: #{tpu_custom_call.1} parent=27 // pred_region
          %s159 = sand.u32 %s23, 1
          %s160 = scalar_lea.sflag [#allocation3], %s159
          %s161 = sand.u32 %s23, 1
          %s162 = smul.addr %s161, 256
          %s163 = scalar_lea.vmem [#allocation2], %s162
          %s164 = smul.u32 32, %s13
          %s166 = ssub.s32 4096, 4096
          %167 = vsyncadd %s160, %s166
          %s168 = smul.addr %s164, 128
          %s169 = scalar_lea.hbm %s0, %s168
          %s170 = sshll.u32 %s163, 4
          %s171 = int_to_ptr.vmem [resolvable:$true] %s170
          %176 = dma.hbm_to_vmem [thread:$0]  %s169, 4096, %s171, %s160, 128, 128, 8
        $region32: #{tpu_custom_call.1} parent=27 // pred_fallthru
          _
      $region28: #{tpu_custom_call.1} parent=5 // pred_fallthru
        _
      %p177 = scmp.le.s32.totalorder 1, %s13
      %p178 = scmp.lt.s32.totalorder %s13, 3
      %p179 = pnand %p177, %p178
      %p180 = pneg %p179
      // Predicated region
      $region33: #{tpu_custom_call.1} parent=5 // pred_check
        _
      $region34: #{tpu_custom_call.1} parent=5 // pred_check_branch
        %182 = sbr.rel (%p179) target = $region36
      $region35: #{tpu_custom_call.1} parent=5 // pred_region
        %s183 = ssub.s32 %s13, 1
        %s184 = sand.u32 %s26, 1
        %s185 = scalar_lea.sflag [#allocation3], %s184
        %s186 = sand.u32 %s26, 1
        %s187 = smul.addr %s186, 256
        %s188 = scalar_lea.vmem [#allocation2], %s187
        // Predicated region
        $region37: #{tpu_custom_call.1} parent=35 // pred_check
          %p189 = pneg %p39
        $region38: #{tpu_custom_call.1} parent=35 // pred_check_branch
          %191 = sbr.rel (%p189) target = $region40
        $region39: #{tpu_custom_call.1} parent=35 // pred_region
          %192 = dma.done %s185, 4096
        $region40: #{tpu_custom_call.1} parent=35 // pred_fallthru
          _
        %s193 = sand.u32 %s26, 1
        %s194 = scalar_lea.sflag [#allocation3], %s193
        %s195 = sand.u32 %s26, 1
        %s196 = smul.addr %s195, 256
        %s197 = scalar_lea.vmem [#allocation2], %s196
        %p198 = pneg %p39
        %p199 = pneg %p36
        %p200 = pneg %p60
        %p201 = pneg %p57
        %p202 = pneg %p81
        %p203 = pneg %p78
        %p204 = pneg %p102
        %p205 = pneg %p99
        %p206 = pneg %p128
        %p207 = pneg %p125
        %s208 = smul.u32 32, %s18
        %p209 = scmp.lt.s32.totalorder %s208, 63
        %s210 = scalar_select %p209, %s208, 63
        %s211 = smul.addr %s210, 8
        %s212 = scalar_lea.vmem %s4, %s211
        %s213 = smul.u32 32, %s18
        %s214 = smul.u32 32, %s18
        %p215 = scmp.lt.s32.totalorder %s214, 63
        %s216 = scalar_select %p215, %s214, 63
        %s217 = smul.addr %s216, 8
        %s218 = scalar_lea.vmem %s4, %s217
        %s219 = smul.u32 32, %s18
        %v221 = vld [vmem:[%s188] sm:$0xff]
        %v222 = vld [vmem:[%s188 + $0x8] sm:$0xff]
        %v223 = vld [vmem:[%s188 + $0x10] sm:$0xff]
        %v224 = vld [vmem:[%s188 + $0x18] sm:$0xff]
        %v225 = vld [vmem:[%s188 + $0x20] sm:$0xff]
        %v226 = vld [vmem:[%s188 + $0x28] sm:$0xff]
        %v227 = vld [vmem:[%s188 + $0x30] sm:$0xff]
        %v228 = vld [vmem:[%s188 + $0x38] sm:$0xff]
        %v229 = vld [vmem:[%s188 + $0x40] sm:$0xff]
        %v230 = vld [vmem:[%s188 + $0x48] sm:$0xff]
        %v231 = vld [vmem:[%s188 + $0x50] sm:$0xff]
        %v232 = vld [vmem:[%s188 + $0x58] sm:$0xff]
        %v233 = vld [vmem:[%s188 + $0x60] sm:$0xff]
        %v234 = vld [vmem:[%s188 + $0x68] sm:$0xff]
        %v235 = vld [vmem:[%s188 + $0x70] sm:$0xff]
        %v236 = vld [vmem:[%s188 + $0x78] sm:$0xff]
        %v237 = vld [vmem:[%s188 + $0x80] sm:$0xff]
        %v238 = vld [vmem:[%s188 + $0x88] sm:$0xff]
        %v239 = vld [vmem:[%s188 + $0x90] sm:$0xff]
        %v240 = vld [vmem:[%s188 + $0x98] sm:$0xff]
        %v241 = vld [vmem:[%s188 + $0xa0] sm:$0xff]
        %v242 = vld [vmem:[%s188 + $0xa8] sm:$0xff]
        %v243 = vld [vmem:[%s188 + $0xb0] sm:$0xff]
        %v244 = vld [vmem:[%s188 + $0xb8] sm:$0xff]
        %v245 = vld [vmem:[%s188 + $0xc0] sm:$0xff]
        %v246 = vld [vmem:[%s188 + $0xc8] sm:$0xff]
        %v247 = vld [vmem:[%s188 + $0xd0] sm:$0xff]
        %v248 = vld [vmem:[%s188 + $0xd8] sm:$0xff]
        %v249 = vld [vmem:[%s188 + $0xe0] sm:$0xff]
        %v250 = vld [vmem:[%s188 + $0xe8] sm:$0xff]
        %v251 = vld [vmem:[%s188 + $0xf0] sm:$0xff]
        %v252 = vld [vmem:[%s188 + $0xf8] sm:$0xff]
        %v253 = vpack.c.bf16 %v222, %v221
        %v254 = vpack.c.bf16 %v224, %v223
        %v255 = vpack.c.bf16 %v226, %v225
        %v256 = vpack.c.bf16 %v228, %v227
        %v257 = vpack.c.bf16 %v230, %v229
        %v258 = vpack.c.bf16 %v232, %v231
        %v259 = vpack.c.bf16 %v234, %v233
        %v260 = vpack.c.bf16 %v236, %v235
        %v261 = vpack.c.bf16 %v238, %v237
        %v262 = vpack.c.bf16 %v240, %v239
        %v263 = vpack.c.bf16 %v242, %v241
        %v264 = vpack.c.bf16 %v244, %v243
        %v265 = vpack.c.bf16 %v246, %v245
        %v266 = vpack.c.bf16 %v248, %v247
        %v267 = vpack.c.bf16 %v250, %v249
        %v268 = vpack.c.bf16 %v252, %v251
        %v269 = vld [vmem:[%s3] sm:$0x1]
        %v270 = vld [vmem:[%s3 + $0x1] sm:$0x1]
        %v271 = vld [vmem:[%s1] sm:$0xf]
        %v272 = vld [vmem:[%s1 + $0x4] sm:$0xf]
        %v273 = vld [vmem:[%s1 + $0x8] sm:$0xf]
        %v274 = vld [vmem:[%s1 + $0xc] sm:$0xf]
        %v275 = vld [vmem:[%s1 + $0x10] sm:$0xf]
        %v276 = vld [vmem:[%s1 + $0x14] sm:$0xf]
        %v277 = vld [vmem:[%s1 + $0x18] sm:$0xf]
        %v278 = vld [vmem:[%s1 + $0x1c] sm:$0xf]
        %v279 = vld [vmem:[%s1 + $0x20] sm:$0xf]
        %v280 = vld [vmem:[%s1 + $0x24] sm:$0xf]
        %v281 = vld [vmem:[%s1 + $0x28] sm:$0xf]
        %v282 = vld [vmem:[%s1 + $0x2c] sm:$0xf]
        %v283 = vld [vmem:[%s1 + $0x30] sm:$0xf]
        %v284 = vld [vmem:[%s1 + $0x34] sm:$0xf]
        %v285 = vld [vmem:[%s1 + $0x38] sm:$0xf]
        %v286 = vld [vmem:[%s1 + $0x3c] sm:$0xf]
        %v287 = vlaneseq
        %v288 = vshrl.u32 %v287, 7
        %v289 = vsub.s32 0, %v288
        %v290 = vrot.slane %v269, %v289
        %v307 = vunpack.c.l.b16 %v271
        %v308 = vunpack.c.l.b16 %v272
        %v309 = vunpack.c.l.b16 %v273
        %v310 = vunpack.c.l.b16 %v274
        %v311 = vunpack.c.l.b16 %v275
        %v312 = vunpack.c.l.b16 %v276
        %v313 = vunpack.c.l.b16 %v277
        %v314 = vunpack.c.l.b16 %v278
        %v315 = vunpack.c.l.b16 %v279
        %v316 = vunpack.c.l.b16 %v280
        %v317 = vunpack.c.l.b16 %v281
        %v318 = vunpack.c.l.b16 %v282
        %v319 = vunpack.c.l.b16 %v283
        %v320 = vunpack.c.l.b16 %v284
        %v321 = vunpack.c.l.b16 %v285
        %v322 = vunpack.c.l.b16 %v286
        %v323 = vpack.c.b16 %v308, %v307
        %v324 = vpack.c.b16 %v310, %v309
        %v325 = vpack.c.b16 %v312, %v311
        %v326 = vpack.c.b16 %v314, %v313
        %v327 = vpack.c.b16 %v316, %v315
        %v328 = vpack.c.b16 %v318, %v317
        %v329 = vpack.c.b16 %v320, %v319
        %v330 = vpack.c.b16 %v322, %v321
        %339 = vmatprep.subr.bf16.mxu0 0
        %340 = vmatpush1.bf16.msra.mxu0 %v323
        %341 = vmatprep.subr.bf16.mxu0 0
        %342 = vmatpush1.bf16.msra.mxu0 %v324
        %343 = vmatprep.subr.bf16.mxu0 0
        %344 = vmatpush1.bf16.msra.mxu0 %v325
        %345 = vmatprep.subr.bf16.mxu0 0
        %346 = vmatpush1.bf16.msra.mxu0 %v326
        %347 = vmatprep.subr.bf16.mxu0 0
        %348 = vmatpush1.bf16.msra.mxu0 %v327
        %349 = vmatprep.subr.bf16.mxu0 0
        %350 = vmatpush1.bf16.msra.mxu0 %v328
        %351 = vmatprep.subr.bf16.mxu0 0
        %352 = vmatpush1.bf16.msra.mxu0 %v329
        %353 = vmatprep.subr.bf16.mxu0 0
        %354 = vmatpush1.bf16.msra.mxu0 %v330
        %355 = vmatprep.subr.bf16.mxu0 0
        %356 = vmatpush1.bf16.msra.mxu0 0
        %357 = vmatprep.subr.bf16.mxu0 0
        %358 = vmatpush1.bf16.msra.mxu0 0
        %359 = vmatprep.subr.bf16.mxu0 0
        %360 = vmatpush1.bf16.msra.mxu0 0
        %361 = vmatprep.subr.bf16.mxu0 0
        %362 = vmatpush1.bf16.msra.mxu0 0
        %363 = vmatprep.subr.bf16.mxu0 0
        %364 = vmatpush1.bf16.msra.mxu0 0
        %365 = vmatprep.subr.bf16.mxu0 0
        %366 = vmatpush1.bf16.msra.mxu0 0
        %367 = vmatprep.subr.bf16.mxu0 0
        %368 = vmatpush1.bf16.msra.mxu0 0
        %369 = vmatprep.subr.bf16.mxu0 0
        %370 = vmatpush1.bf16.msra.mxu0 0
        %371 = vmatprep.mubr.bf16.mxu0 0
        %372 = vmatmul.mubr.bf16.gmra.mrb[0].mxu0 %v253
        %v373 = vpop.f32.mrb[0].mxu0
        %v374 = vadd.f32 %v290, %v373
        %v375 = vpop.f32.mrb[0].mxu0
        %v376 = vpop.f32.mrb[0].mxu0
        %v377 = vadd.f32 %v290, %v376
        %v378 = vpop.f32.mrb[0].mxu0
        %379 = vmatprep.mubr.bf16.mxu0 0
        %380 = vmatmul.mubr.bf16.gmra.mrb[0].mxu0 %v254
        %v381 = vpop.f32.mrb[0].mxu0
        %v382 = vadd.f32 %v290, %v381
        %v383 = vpop.f32.mrb[0].mxu0
        %v384 = vpop.f32.mrb[0].mxu0
        %v385 = vadd.f32 %v290, %v384
        %v386 = vpop.f32.mrb[0].mxu0
        %387 = vmatprep.mubr.bf16.mxu0 0
        %388 = vmatmul.mubr.bf16.gmra.mrb[0].mxu0 %v255
        %v389 = vpop.f32.mrb[0].mxu0
        %v390 = vadd.f32 %v290, %v389
        %v391 = vpop.f32.mrb[0].mxu0
        %v392 = vpop.f32.mrb[0].mxu0
        %v393 = vadd.f32 %v290, %v392
        %v394 = vpop.f32.mrb[0].mxu0
        %395 = vmatprep.mubr.bf16.mxu0 0
        %396 = vmatmul.mubr.bf16.gmra.mrb[0].mxu0 %v256
        %v397 = vpop.f32.mrb[0].mxu0
        %v398 = vadd.f32 %v290, %v397
        %v399 = vpop.f32.mrb[0].mxu0
        %v400 = vpop.f32.mrb[0].mxu0
        %v401 = vadd.f32 %v290, %v400
        %v402 = vpop.f32.mrb[0].mxu0
        %403 = vmatprep.mubr.bf16.mxu0 0
        %404 = vmatmul.mubr.bf16.gmra.mrb[0].mxu0 %v257
        %v405 = vpop.f32.mrb[0].mxu0
        %v406 = vadd.f32 %v290, %v405
        %v407 = vpop.f32.mrb[0].mxu0
        %v408 = vpop.f32.mrb[0].mxu0
        %v409 = vadd.f32 %v290, %v408
        %v410 = vpop.f32.mrb[0].mxu0
        %411 = vmatprep.mubr.bf16.mxu0 0
        %412 = vmatmul.mubr.bf16.gmra.mrb[0].mxu0 %v258
        %v413 = vpop.f32.mrb[0].mxu0
        %v414 = vadd.f32 %v290, %v413
        %v415 = vpop.f32.mrb[0].mxu0
        %v416 = vpop.f32.mrb[0].mxu0
        %v417 = vadd.f32 %v290, %v416
        %v418 = vpop.f32.mrb[0].mxu0
        %419 = vmatprep.mubr.bf16.mxu0 0
        %420 = vmatmul.mubr.bf16.gmra.mrb[0].mxu0 %v259
        %v421 = vpop.f32.mrb[0].mxu0
        %v422 = vadd.f32 %v290, %v421
        %v423 = vpop.f32.mrb[0].mxu0
        %v424 = vpop.f32.mrb[0].mxu0
        %v425 = vadd.f32 %v290, %v424
        %v426 = vpop.f32.mrb[0].mxu0
        %427 = vmatprep.mubr.bf16.mxu0 0
        %428 = vmatmul.mubr.bf16.gmra.mrb[0].mxu0 %v260
        %v429 = vpop.f32.mrb[0].mxu0
        %v430 = vadd.f32 %v290, %v429
        %v431 = vpop.f32.mrb[0].mxu0
        %v432 = vpop.f32.mrb[0].mxu0
        %v433 = vadd.f32 %v290, %v432
        %v434 = vpop.f32.mrb[0].mxu0
        %435 = vmatprep.mubr.bf16.mxu0 0
        %436 = vmatmul.mubr.bf16.gmra.mrb[0].mxu0 %v261
        %v437 = vpop.f32.mrb[0].mxu0
        %v438 = vadd.f32 %v290, %v437
        %v439 = vpop.f32.mrb[0].mxu0
        %v440 = vpop.f32.mrb[0].mxu0
        %v441 = vadd.f32 %v290, %v440
        %v442 = vpop.f32.mrb[0].mxu0
        %443 = vmatprep.mubr.bf16.mxu0 0
        %444 = vmatmul.mubr.bf16.gmra.mrb[0].mxu0 %v262
        %v445 = vpop.f32.mrb[0].mxu0
        %v446 = vadd.f32 %v290, %v445
        %v447 = vpop.f32.mrb[0].mxu0
        %v448 = vpop.f32.mrb[0].mxu0
        %v449 = vadd.f32 %v290, %v448
        %v450 = vpop.f32.mrb[0].mxu0
        %451 = vmatprep.mubr.bf16.mxu0 0
        %452 = vmatmul.mubr.bf16.gmra.mrb[0].mxu0 %v263
        %v453 = vpop.f32.mrb[0].mxu0
        %v454 = vadd.f32 %v290, %v453
        %v455 = vpop.f32.mrb[0].mxu0
        %v456 = vpop.f32.mrb[0].mxu0
        %v457 = vadd.f32 %v290, %v456
        %v458 = vpop.f32.mrb[0].mxu0
        %459 = vmatprep.mubr.bf16.mxu0 0
        %460 = vmatmul.mubr.bf16.gmra.mrb[0].mxu0 %v264
        %v461 = vpop.f32.mrb[0].mxu0
        %v462 = vadd.f32 %v290, %v461
        %v463 = vpop.f32.mrb[0].mxu0
        %v464 = vpop.f32.mrb[0].mxu0
        %v465 = vadd.f32 %v290, %v464
        %v466 = vpop.f32.mrb[0].mxu0
        %467 = vmatprep.mubr.bf16.mxu0 0
        %468 = vmatmul.mubr.bf16.gmra.mrb[0].mxu0 %v265
        %v469 = vpop.f32.mrb[0].mxu0
        %v470 = vadd.f32 %v290, %v469
        %v471 = vpop.f32.mrb[0].mxu0
        %v472 = vpop.f32.mrb[0].mxu0
        %v473 = vadd.f32 %v290, %v472
        %v474 = vpop.f32.mrb[0].mxu0
        %475 = vmatprep.mubr.bf16.mxu0 0
        %476 = vmatmul.mubr.bf16.gmra.mrb[0].mxu0 %v266
        %v477 = vpop.f32.mrb[0].mxu0
        %v478 = vadd.f32 %v290, %v477
        %v479 = vpop.f32.mrb[0].mxu0
        %v480 = vpop.f32.mrb[0].mxu0
        %v481 = vadd.f32 %v290, %v480
        %v482 = vpop.f32.mrb[0].mxu0
        %483 = vmatprep.mubr.bf16.mxu0 0
        %484 = vmatmul.mubr.bf16.gmra.mrb[0].mxu0 %v267
        %v485 = vpop.f32.mrb[0].mxu0
        %v486 = vadd.f32 %v290, %v485
        %v487 = vpop.f32.mrb[0].mxu0
        %v488 = vpop.f32.mrb[0].mxu0
        %v489 = vadd.f32 %v290, %v488
        %v490 = vpop.f32.mrb[0].mxu0
        %491 = vmatprep.mubr.bf16.mxu0 0
        %492 = vmatmul.mubr.bf16.gmra.mrb[0].mxu0 %v268
        %v493 = vpop.f32.mrb[0].mxu0
        %v494 = vadd.f32 %v290, %v493
        %v495 = vpop.f32.mrb[0].mxu0
        %v496 = vpop.f32.mrb[0].mxu0
        %v497 = vadd.f32 %v290, %v496
        %v498 = vpop.f32.mrb[0].mxu0
        %499 = vdwg.mxu0
        %v500 = vmax.f32 %v374, 0.0
        %v501 = vmax.f32 %v377, 0.0
        %v502 = vmax.f32 %v382, 0.0
        %v503 = vmax.f32 %v385, 0.0
        %v504 = vmax.f32 %v390, 0.0
        %v505 = vmax.f32 %v393, 0.0
        %v506 = vmax.f32 %v398, 0.0
        %v507 = vmax.f32 %v401, 0.0
        %v508 = vmax.f32 %v406, 0.0
        %v509 = vmax.f32 %v409, 0.0
        %v510 = vmax.f32 %v414, 0.0
        %v511 = vmax.f32 %v417, 0.0
        %v512 = vmax.f32 %v422, 0.0
        %v513 = vmax.f32 %v425, 0.0
        %v514 = vmax.f32 %v430, 0.0
        %v515 = vmax.f32 %v433, 0.0
        %v516 = vmax.f32 %v438, 0.0
        %v517 = vmax.f32 %v441, 0.0
        %v518 = vmax.f32 %v446, 0.0
        %v519 = vmax.f32 %v449, 0.0
        %v520 = vmax.f32 %v454, 0.0
        %v521 = vmax.f32 %v457, 0.0
        %v522 = vmax.f32 %v462, 0.0
        %v523 = vmax.f32 %v465, 0.0
        %v524 = vmax.f32 %v470, 0.0
        %v525 = vmax.f32 %v473, 0.0
        %v526 = vmax.f32 %v478, 0.0
        %v527 = vmax.f32 %v481, 0.0
        %v528 = vmax.f32 %v486, 0.0
        %v529 = vmax.f32 %v489, 0.0
        %v530 = vmax.f32 %v494, 0.0
        %v531 = vmax.f32 %v497, 0.0
        %v532 = vpack.c.bf16 %v501, %v500
        %v533 = vpack.c.bf16 %v503, %v502
        %v534 = vpack.c.bf16 %v505, %v504
        %v535 = vpack.c.bf16 %v507, %v506
        %v536 = vpack.c.bf16 %v509, %v508
        %v537 = vpack.c.bf16 %v511, %v510
        %v538 = vpack.c.bf16 %v513, %v512
        %v539 = vpack.c.bf16 %v515, %v514
        %v540 = vpack.c.bf16 %v517, %v516
        %v541 = vpack.c.bf16 %v519, %v518
        %v542 = vpack.c.bf16 %v521, %v520
        %v543 = vpack.c.bf16 %v523, %v522
        %v544 = vpack.c.bf16 %v525, %v524
        %v545 = vpack.c.bf16 %v527, %v526
        %v546 = vpack.c.bf16 %v529, %v528
        %v547 = vpack.c.bf16 %v531, %v530
        %v548 = vld [vmem:[%s2] sm:$0xf]
        %v549 = vld [vmem:[%s2 + $0x4] sm:$0xf]
        %v550 = vld [vmem:[%s2 + $0x8] sm:$0xf]
        %v551 = vld [vmem:[%s2 + $0xc] sm:$0xf]
        %v552 = vld [vmem:[%s2 + $0x10] sm:$0xf]
        %v553 = vld [vmem:[%s2 + $0x14] sm:$0xf]
        %v554 = vld [vmem:[%s2 + $0x18] sm:$0xf]
        %v555 = vld [vmem:[%s2 + $0x1c] sm:$0xf]
        %v564 = vunpack.c.l.b16 %v548
        %v565 = vunpack.c.l.b16 %v549
        %v566 = vunpack.c.l.b16 %v550
        %v567 = vunpack.c.l.b16 %v551
        %v568 = vunpack.c.l.b16 %v552
        %v569 = vunpack.c.l.b16 %v553
        %v570 = vunpack.c.l.b16 %v554
        %v571 = vunpack.c.l.b16 %v555
        %v572 = vpack.c.b16 %v565, %v564
        %v573 = vpack.c.b16 %v567, %v566
        %v574 = vpack.c.b16 %v569, %v568
        %v575 = vpack.c.b16 %v571, %v570
        %581 = vrot.lane.b32.xlu0 %v290, 64
        %v582 = vpop.permute.xlu0 %581
        %vm584 = vcmask 523264
        %v586 = vsel %vm584, %v532, 0
        %v589 = vsel %vm584, %v533, 0
        %v592 = vsel %vm584, %v534, 0
        %v595 = vsel %vm584, %v535, 0
        %v598 = vsel %vm584, %v536, 0
        %v601 = vsel %vm584, %v537, 0
        %v604 = vsel %vm584, %v538, 0
        %v607 = vsel %vm584, %v539, 0
        %v610 = vsel %vm584, %v540, 0
        %v613 = vsel %vm584, %v541, 0
        %v616 = vsel %vm584, %v542, 0
        %v619 = vsel %vm584, %v543, 0
        %v622 = vsel %vm584, %v544, 0
        %v625 = vsel %vm584, %v545, 0
        %v628 = vsel %vm584, %v546, 0
        %v631 = vsel %vm584, %v547, 0
        %633 = vmatprep.subr.bf16.mxu0 0
        %634 = vmatpush1.bf16.msra.mxu0 %v572
        %635 = vmatprep.subr.bf16.mxu0 0
        %636 = vmatpush1.bf16.msra.mxu0 %v573
        %637 = vmatprep.subr.bf16.mxu0 0
        %638 = vmatpush1.bf16.msra.mxu0 %v574
        %639 = vmatprep.subr.bf16.mxu0 0
        %640 = vmatpush1.bf16.msra.mxu0 %v575
        %641 = vmatprep.subr.bf16.mxu0 0
        %642 = vmatpush1.bf16.msra.mxu0 0
        %643 = vmatprep.subr.bf16.mxu0 0
        %644 = vmatpush1.bf16.msra.mxu0 0
        %645 = vmatprep.subr.bf16.mxu0 0
        %646 = vmatpush1.bf16.msra.mxu0 0
        %647 = vmatprep.subr.bf16.mxu0 0
        %648 = vmatpush1.bf16.msra.mxu0 0
        %649 = vmatprep.subr.bf16.mxu0 0
        %650 = vmatpush1.bf16.msra.mxu0 0
        %651 = vmatprep.subr.bf16.mxu0 0
        %652 = vmatpush1.bf16.msra.mxu0 0
        %653 = vmatprep.subr.bf16.mxu0 0
        %654 = vmatpush1.bf16.msra.mxu0 0
        %655 = vmatprep.subr.bf16.mxu0 0
        %656 = vmatpush1.bf16.msra.mxu0 0
        %657 = vmatprep.subr.bf16.mxu0 0
        %658 = vmatpush1.bf16.msra.mxu0 0
        %659 = vmatprep.subr.bf16.mxu0 0
        %660 = vmatpush1.bf16.msra.mxu0 0
        %661 = vmatprep.subr.bf16.mxu0 0
        %662 = vmatpush1.bf16.msra.mxu0 0
        %663 = vmatprep.subr.bf16.mxu0 0
        %664 = vmatpush1.bf16.msra.mxu0 0
        %665 = vmatprep.mubr.bf16.mxu0 0
        %666 = vmatmul.mubr.bf16.gmra.mrb[0].mxu0 %v586
        %v667 = vpop.f32.mrb[0].mxu0
        %v668 = vadd.f32 %v582, %v667
        %v669 = vpop.f32.mrb[0].mxu0
        %v670 = vpop.f32.mrb[0].mxu0
        %v671 = vadd.f32 %v582, %v670
        %v672 = vpop.f32.mrb[0].mxu0
        %673 = vmatprep.mubr.bf16.mxu0 0
        %674 = vmatmul.mubr.bf16.gmra.mrb[0].mxu0 %v589
        %v675 = vpop.f32.mrb[0].mxu0
        %v676 = vadd.f32 %v582, %v675
        %v677 = vpop.f32.mrb[0].mxu0
        %v678 = vpop.f32.mrb[0].mxu0
        %v679 = vadd.f32 %v582, %v678
        %v680 = vpop.f32.mrb[0].mxu0
        %681 = vmatprep.mubr.bf16.mxu0 0
        %682 = vmatmul.mubr.bf16.gmra.mrb[0].mxu0 %v592
        %v683 = vpop.f32.mrb[0].mxu0
        %v684 = vadd.f32 %v582, %v683
        %v685 = vpop.f32.mrb[0].mxu0
        %v686 = vpop.f32.mrb[0].mxu0
        %v687 = vadd.f32 %v582, %v686
        %v688 = vpop.f32.mrb[0].mxu0
        %689 = vmatprep.mubr.bf16.mxu0 0
        %690 = vmatmul.mubr.bf16.gmra.mrb[0].mxu0 %v595
        %v691 = vpop.f32.mrb[0].mxu0
        %v692 = vadd.f32 %v582, %v691
        %v693 = vpop.f32.mrb[0].mxu0
        %v694 = vpop.f32.mrb[0].mxu0
        %v695 = vadd.f32 %v582, %v694
        %v696 = vpop.f32.mrb[0].mxu0
        %697 = vmatprep.mubr.bf16.mxu0 0
        %698 = vmatmul.mubr.bf16.gmra.mrb[0].mxu0 %v598
        %v699 = vpop.f32.mrb[0].mxu0
        %v700 = vadd.f32 %v582, %v699
        %v701 = vpop.f32.mrb[0].mxu0
        %v702 = vpop.f32.mrb[0].mxu0
        %v703 = vadd.f32 %v582, %v702
        %v704 = vpop.f32.mrb[0].mxu0
        %705 = vmatprep.mubr.bf16.mxu0 0
        %706 = vmatmul.mubr.bf16.gmra.mrb[0].mxu0 %v601
        %v707 = vpop.f32.mrb[0].mxu0
        %v708 = vadd.f32 %v582, %v707
        %v709 = vpop.f32.mrb[0].mxu0
        %v710 = vpop.f32.mrb[0].mxu0
        %v711 = vadd.f32 %v582, %v710
        %v712 = vpop.f32.mrb[0].mxu0
        %713 = vmatprep.mubr.bf16.mxu0 0
        %714 = vmatmul.mubr.bf16.gmra.mrb[0].mxu0 %v604
        %v715 = vpop.f32.mrb[0].mxu0
        %v716 = vadd.f32 %v582, %v715
        %v717 = vpop.f32.mrb[0].mxu0
        %v718 = vpop.f32.mrb[0].mxu0
        %v719 = vadd.f32 %v582, %v718
        %v720 = vpop.f32.mrb[0].mxu0
        %721 = vmatprep.mubr.bf16.mxu0 0
        %722 = vmatmul.mubr.bf16.gmra.mrb[0].mxu0 %v607
        %v723 = vpop.f32.mrb[0].mxu0
        %v724 = vadd.f32 %v582, %v723
        %v725 = vpop.f32.mrb[0].mxu0
        %v726 = vpop.f32.mrb[0].mxu0
        %v727 = vadd.f32 %v582, %v726
        %v728 = vpop.f32.mrb[0].mxu0
        %729 = vmatprep.mubr.bf16.mxu0 0
        %730 = vmatmul.mubr.bf16.gmra.mrb[0].mxu0 %v610
        %v731 = vpop.f32.mrb[0].mxu0
        %v732 = vadd.f32 %v582, %v731
        %v733 = vpop.f32.mrb[0].mxu0
        %v734 = vpop.f32.mrb[0].mxu0
        %v735 = vadd.f32 %v582, %v734
        %v736 = vpop.f32.mrb[0].mxu0
        %737 = vmatprep.mubr.bf16.mxu0 0
        %738 = vmatmul.mubr.bf16.gmra.mrb[0].mxu0 %v613
        %v739 = vpop.f32.mrb[0].mxu0
        %v740 = vadd.f32 %v582, %v739
        %v741 = vpop.f32.mrb[0].mxu0
        %v742 = vpop.f32.mrb[0].mxu0
        %v743 = vadd.f32 %v582, %v742
        %v744 = vpop.f32.mrb[0].mxu0
        %745 = vmatprep.mubr.bf16.mxu0 0
        %746 = vmatmul.mubr.bf16.gmra.mrb[0].mxu0 %v616
        %v747 = vpop.f32.mrb[0].mxu0
        %v748 = vadd.f32 %v582, %v747
        %v749 = vpop.f32.mrb[0].mxu0
        %v750 = vpop.f32.mrb[0].mxu0
        %v751 = vadd.f32 %v582, %v750
        %v752 = vpop.f32.mrb[0].mxu0
        %753 = vmatprep.mubr.bf16.mxu0 0
        %754 = vmatmul.mubr.bf16.gmra.mrb[0].mxu0 %v619
        %v755 = vpop.f32.mrb[0].mxu0
        %v756 = vadd.f32 %v582, %v755
        %v757 = vpop.f32.mrb[0].mxu0
        %v758 = vpop.f32.mrb[0].mxu0
        %v759 = vadd.f32 %v582, %v758
        %v760 = vpop.f32.mrb[0].mxu0
        %761 = vmatprep.mubr.bf16.mxu0 0
        %762 = vmatmul.mubr.bf16.gmra.mrb[0].mxu0 %v622
        %v763 = vpop.f32.mrb[0].mxu0
        %v764 = vadd.f32 %v582, %v763
        %v765 = vpop.f32.mrb[0].mxu0
        %v766 = vpop.f32.mrb[0].mxu0
        %v767 = vadd.f32 %v582, %v766
        %v768 = vpop.f32.mrb[0].mxu0
        %769 = vmatprep.mubr.bf16.mxu0 0
        %770 = vmatmul.mubr.bf16.gmra.mrb[0].mxu0 %v625
        %v771 = vpop.f32.mrb[0].mxu0
        %v772 = vadd.f32 %v582, %v771
        %v773 = vpop.f32.mrb[0].mxu0
        %v774 = vpop.f32.mrb[0].mxu0
        %v775 = vadd.f32 %v582, %v774
        %v776 = vpop.f32.mrb[0].mxu0
        %777 = vmatprep.mubr.bf16.mxu0 0
        %778 = vmatmul.mubr.bf16.gmra.mrb[0].mxu0 %v628
        %v779 = vpop.f32.mrb[0].mxu0
        %v780 = vadd.f32 %v582, %v779
        %v781 = vpop.f32.mrb[0].mxu0
        %v782 = vpop.f32.mrb[0].mxu0
        %v783 = vadd.f32 %v582, %v782
        %v784 = vpop.f32.mrb[0].mxu0
        %785 = vmatprep.mubr.bf16.mxu0 0
        %786 = vmatmul.mubr.bf16.gmra.mrb[0].mxu0 %v631
        %v787 = vpop.f32.mrb[0].mxu0
        %v788 = vadd.f32 %v582, %v787
        %v789 = vpop.f32.mrb[0].mxu0
        %v790 = vpop.f32.mrb[0].mxu0
        %v791 = vadd.f32 %v582, %v790
        %v792 = vpop.f32.mrb[0].mxu0
        %793 = vdwg.mxu0
        %v794 = vmax.f32 %v668, 0.0
        %v795 = vmax.f32 %v671, 0.0
        %v796 = vmax.f32 %v676, 0.0
        %v797 = vmax.f32 %v679, 0.0
        %v798 = vmax.f32 %v684, 0.0
        %v799 = vmax.f32 %v687, 0.0
        %v800 = vmax.f32 %v692, 0.0
        %v801 = vmax.f32 %v695, 0.0
        %v802 = vmax.f32 %v700, 0.0
        %v803 = vmax.f32 %v703, 0.0
        %v804 = vmax.f32 %v708, 0.0
        %v805 = vmax.f32 %v711, 0.0
        %v806 = vmax.f32 %v716, 0.0
        %v807 = vmax.f32 %v719, 0.0
        %v808 = vmax.f32 %v724, 0.0
        %v809 = vmax.f32 %v727, 0.0
        %v810 = vmax.f32 %v732, 0.0
        %v811 = vmax.f32 %v735, 0.0
        %v812 = vmax.f32 %v740, 0.0
        %v813 = vmax.f32 %v743, 0.0
        %v814 = vmax.f32 %v748, 0.0
        %v815 = vmax.f32 %v751, 0.0
        %v816 = vmax.f32 %v756, 0.0
        %v817 = vmax.f32 %v759, 0.0
        %v818 = vmax.f32 %v764, 0.0
        %v819 = vmax.f32 %v767, 0.0
        %v820 = vmax.f32 %v772, 0.0
        %v821 = vmax.f32 %v775, 0.0
        %v822 = vmax.f32 %v780, 0.0
        %v823 = vmax.f32 %v783, 0.0
        %v824 = vmax.f32 %v788, 0.0
        %v825 = vmax.f32 %v791, 0.0
        %v826 = vlaneseq
        %v827 = vshrl.u32 %v826, 7
        %v828 = vsub.s32 0, %v827
        %v829 = vrot.slane %v270, %v828
        %v830 = vmul.f32 %v794, %v829
        %v831 = vmul.f32 %v795, %v829
        %v832 = vmul.f32 %v796, %v829
        %v833 = vmul.f32 %v797, %v829
        %v834 = vmul.f32 %v798, %v829
        %v835 = vmul.f32 %v799, %v829
        %v836 = vmul.f32 %v800, %v829
        %v837 = vmul.f32 %v801, %v829
        %v838 = vmul.f32 %v802, %v829
        %v839 = vmul.f32 %v803, %v829
        %v840 = vmul.f32 %v804, %v829
        %v841 = vmul.f32 %v805, %v829
        %v842 = vmul.f32 %v806, %v829
        %v843 = vmul.f32 %v807, %v829
        %v844 = vmul.f32 %v808, %v829
        %v845 = vmul.f32 %v809, %v829
        %v846 = vmul.f32 %v810, %v829
        %v847 = vmul.f32 %v811, %v829
        %v848 = vmul.f32 %v812, %v829
        %v849 = vmul.f32 %v813, %v829
        %v850 = vmul.f32 %v814, %v829
        %v851 = vmul.f32 %v815, %v829
        %v852 = vmul.f32 %v816, %v829
        %v853 = vmul.f32 %v817, %v829
        %v854 = vmul.f32 %v818, %v829
        %v855 = vmul.f32 %v819, %v829
        %v856 = vmul.f32 %v820, %v829
        %v857 = vmul.f32 %v821, %v829
        %v858 = vmul.f32 %v822, %v829
        %v859 = vmul.f32 %v823, %v829
        %v860 = vmul.f32 %v824, %v829
        %v861 = vmul.f32 %v825, %v829
        %vm862 = vcmask 261120
        %v863 = vsel %vm862, %v830, 0.0
        %864 = vadd.xlane.f32.xlu0 %v863
        %v865 = vpop.xlane.xlu0 %864
        %v866 = vsel %vm862, %v831, 0.0
        %867 = vadd.xlane.f32.xlu0 %v866
        %v868 = vpop.xlane.xlu0 %867
        %v869 = vsel %vm862, %v832, 0.0
        %870 = vadd.xlane.f32.xlu0 %v869
        %v871 = vpop.xlane.xlu0 %870
        %v872 = vsel %vm862, %v833, 0.0
        %873 = vadd.xlane.f32.xlu0 %v872
        %v874 = vpop.xlane.xlu0 %873
        %v875 = vsel %vm862, %v834, 0.0
        %876 = vadd.xlane.f32.xlu0 %v875
        %v877 = vpop.xlane.xlu0 %876
        %v878 = vsel %vm862, %v835, 0.0
        %879 = vadd.xlane.f32.xlu0 %v878
        %v880 = vpop.xlane.xlu0 %879
        %v881 = vsel %vm862, %v836, 0.0
        %882 = vadd.xlane.f32.xlu0 %v881
        %v883 = vpop.xlane.xlu0 %882
        %v884 = vsel %vm862, %v837, 0.0
        %885 = vadd.xlane.f32.xlu0 %v884
        %v886 = vpop.xlane.xlu0 %885
        %v887 = vsel %vm862, %v838, 0.0
        %888 = vadd.xlane.f32.xlu0 %v887
        %v889 = vpop.xlane.xlu0 %888
        %v890 = vsel %vm862, %v839, 0.0
        %891 = vadd.xlane.f32.xlu0 %v890
        %v892 = vpop.xlane.xlu0 %891
        %v893 = vsel %vm862, %v840, 0.0
        %894 = vadd.xlane.f32.xlu0 %v893
        %v895 = vpop.xlane.xlu0 %894
        %v896 = vsel %vm862, %v841, 0.0
        %897 = vadd.xlane.f32.xlu0 %v896
        %v898 = vpop.xlane.xlu0 %897
        %v899 = vsel %vm862, %v842, 0.0
        %900 = vadd.xlane.f32.xlu0 %v899
        %v901 = vpop.xlane.xlu0 %900
        %v902 = vsel %vm862, %v843, 0.0
        %903 = vadd.xlane.f32.xlu0 %v902
        %v904 = vpop.xlane.xlu0 %903
        %v905 = vsel %vm862, %v844, 0.0
        %906 = vadd.xlane.f32.xlu0 %v905
        %v907 = vpop.xlane.xlu0 %906
        %v908 = vsel %vm862, %v845, 0.0
        %909 = vadd.xlane.f32.xlu0 %v908
        %v910 = vpop.xlane.xlu0 %909
        %v911 = vsel %vm862, %v846, 0.0
        %912 = vadd.xlane.f32.xlu0 %v911
        %v913 = vpop.xlane.xlu0 %912
        %v914 = vsel %vm862, %v847, 0.0
        %915 = vadd.xlane.f32.xlu0 %v914
        %v916 = vpop.xlane.xlu0 %915
        %v917 = vsel %vm862, %v848, 0.0
        %918 = vadd.xlane.f32.xlu0 %v917
        %v919 = vpop.xlane.xlu0 %918
        %v920 = vsel %vm862, %v849, 0.0
        %921 = vadd.xlane.f32.xlu0 %v920
        %v922 = vpop.xlane.xlu0 %921
        %v923 = vsel %vm862, %v850, 0.0
        %924 = vadd.xlane.f32.xlu0 %v923
        %v925 = vpop.xlane.xlu0 %924
        %v926 = vsel %vm862, %v851, 0.0
        %927 = vadd.xlane.f32.xlu0 %v926
        %v928 = vpop.xlane.xlu0 %927
        %v929 = vsel %vm862, %v852, 0.0
        %930 = vadd.xlane.f32.xlu0 %v929
        %v931 = vpop.xlane.xlu0 %930
        %v932 = vsel %vm862, %v853, 0.0
        %933 = vadd.xlane.f32.xlu0 %v932
        %v934 = vpop.xlane.xlu0 %933
        %v935 = vsel %vm862, %v854, 0.0
        %936 = vadd.xlane.f32.xlu0 %v935
        %v937 = vpop.xlane.xlu0 %936
        %v938 = vsel %vm862, %v855, 0.0
        %939 = vadd.xlane.f32.xlu0 %v938
        %v940 = vpop.xlane.xlu0 %939
        %v941 = vsel %vm862, %v856, 0.0
        %942 = vadd.xlane.f32.xlu0 %v941
        %v943 = vpop.xlane.xlu0 %942
        %v944 = vsel %vm862, %v857, 0.0
        %945 = vadd.xlane.f32.xlu0 %v944
        %v946 = vpop.xlane.xlu0 %945
        %v947 = vsel %vm862, %v858, 0.0
        %948 = vadd.xlane.f32.xlu0 %v947
        %v949 = vpop.xlane.xlu0 %948
        %v950 = vsel %vm862, %v859, 0.0
        %951 = vadd.xlane.f32.xlu0 %v950
        %v952 = vpop.xlane.xlu0 %951
        %v953 = vsel %vm862, %v860, 0.0
        %954 = vadd.xlane.f32.xlu0 %v953
        %v955 = vpop.xlane.xlu0 %954
        %v956 = vsel %vm862, %v861, 0.0
        %957 = vadd.xlane.f32.xlu0 %v956
        %v958 = vpop.xlane.xlu0 %957
        %v959 = vadd.f32 %v865, %v290
        %v960 = vadd.f32 %v868, %v290
        %v961 = vadd.f32 %v871, %v290
        %v962 = vadd.f32 %v874, %v290
        %v963 = vadd.f32 %v877, %v290
        %v964 = vadd.f32 %v880, %v290
        %v965 = vadd.f32 %v883, %v290
        %v966 = vadd.f32 %v886, %v290
        %v967 = vadd.f32 %v889, %v290
        %v968 = vadd.f32 %v892, %v290
        %v969 = vadd.f32 %v895, %v290
        %v970 = vadd.f32 %v898, %v290
        %v971 = vadd.f32 %v901, %v290
        %v972 = vadd.f32 %v904, %v290
        %v973 = vadd.f32 %v907, %v290
        %v974 = vadd.f32 %v910, %v290
        %v975 = vadd.f32 %v913, %v290
        %v976 = vadd.f32 %v916, %v290
        %v977 = vadd.f32 %v919, %v290
        %v978 = vadd.f32 %v922, %v290
        %v979 = vadd.f32 %v925, %v290
        %v980 = vadd.f32 %v928, %v290
        %v981 = vadd.f32 %v931, %v290
        %v982 = vadd.f32 %v934, %v290
        %v983 = vadd.f32 %v937, %v290
        %v984 = vadd.f32 %v940, %v290
        %v985 = vadd.f32 %v943, %v290
        %v986 = vadd.f32 %v946, %v290
        %v987 = vadd.f32 %v949, %v290
        %v988 = vadd.f32 %v952, %v290
        %v989 = vadd.f32 %v955, %v290
        %v990 = vadd.f32 %v958, %v290
        %v991 = vsub.f32 0.0, %v959
        %v992 = vsub.f32 0.0, %v960
        %v993 = vsub.f32 0.0, %v961
        %v994 = vsub.f32 0.0, %v962
        %v995 = vsub.f32 0.0, %v963
        %v996 = vsub.f32 0.0, %v964
        %v997 = vsub.f32 0.0, %v965
        %v998 = vsub.f32 0.0, %v966
        %v999 = vsub.f32 0.0, %v967
        %v1000 = vsub.f32 0.0, %v968
        %v1001 = vsub.f32 0.0, %v969
        %v1002 = vsub.f32 0.0, %v970
        %v1003 = vsub.f32 0.0, %v971
        %v1004 = vsub.f32 0.0, %v972
        %v1005 = vsub.f32 0.0, %v973
        %v1006 = vsub.f32 0.0, %v974
        %v1007 = vsub.f32 0.0, %v975
        %v1008 = vsub.f32 0.0, %v976
        %v1009 = vsub.f32 0.0, %v977
        %v1010 = vsub.f32 0.0, %v978
        %v1011 = vsub.f32 0.0, %v979
        %v1012 = vsub.f32 0.0, %v980
        %v1013 = vsub.f32 0.0, %v981
        %v1014 = vsub.f32 0.0, %v982
        %v1015 = vsub.f32 0.0, %v983
        %v1016 = vsub.f32 0.0, %v984
        %v1017 = vsub.f32 0.0, %v985
        %v1018 = vsub.f32 0.0, %v986
        %v1019 = vsub.f32 0.0, %v987
        %v1020 = vsub.f32 0.0, %v988
        %v1021 = vsub.f32 0.0, %v989
        %v1022 = vsub.f32 0.0, %v990
        %v1023 = vmul.f32 %v991, 1.442695
        %v1024 = vpow.pop %v1023
        %v1025 = vmul.f32 %v992, 1.442695
        %v1026 = vpow.pop %v1025
        %v1027 = vmul.f32 %v993, 1.442695
        %v1028 = vpow.pop %v1027
        %v1029 = vmul.f32 %v994, 1.442695
        %v1030 = vpow.pop %v1029
        %v1031 = vmul.f32 %v995, 1.442695
        %v1032 = vpow.pop %v1031
        %v1033 = vmul.f32 %v996, 1.442695
        %v1034 = vpow.pop %v1033
        %v1035 = vmul.f32 %v997, 1.442695
        %v1036 = vpow.pop %v1035
        %v1037 = vmul.f32 %v998, 1.442695
        %v1038 = vpow.pop %v1037
        %v1039 = vmul.f32 %v999, 1.442695
        %v1040 = vpow.pop %v1039
        %v1041 = vmul.f32 %v1000, 1.442695
        %v1042 = vpow.pop %v1041
        %v1043 = vmul.f32 %v1001, 1.442695
        %v1044 = vpow.pop %v1043
        %v1045 = vmul.f32 %v1002, 1.442695
        %v1046 = vpow.pop %v1045
        %v1047 = vmul.f32 %v1003, 1.442695
        %v1048 = vpow.pop %v1047
        %v1049 = vmul.f32 %v1004, 1.442695
        %v1050 = vpow.pop %v1049
        %v1051 = vmul.f32 %v1005, 1.442695
        %v1052 = vpow.pop %v1051
        %v1053 = vmul.f32 %v1006, 1.442695
        %v1054 = vpow.pop %v1053
        %v1055 = vmul.f32 %v1007, 1.442695
        %v1056 = vpow.pop %v1055
        %v1057 = vmul.f32 %v1008, 1.442695
        %v1058 = vpow.pop %v1057
        %v1059 = vmul.f32 %v1009, 1.442695
        %v1060 = vpow.pop %v1059
        %v1061 = vmul.f32 %v1010, 1.442695
        %v1062 = vpow.pop %v1061
        %v1063 = vmul.f32 %v1011, 1.442695
        %v1064 = vpow.pop %v1063
        %v1065 = vmul.f32 %v1012, 1.442695
        %v1066 = vpow.pop %v1065
        %v1067 = vmul.f32 %v1013, 1.442695
        %v1068 = vpow.pop %v1067
        %v1069 = vmul.f32 %v1014, 1.442695
        %v1070 = vpow.pop %v1069
        %v1071 = vmul.f32 %v1015, 1.442695
        %v1072 = vpow.pop %v1071
        %v1073 = vmul.f32 %v1016, 1.442695
        %v1074 = vpow.pop %v1073
        %v1075 = vmul.f32 %v1017, 1.442695
        %v1076 = vpow.pop %v1075
        %v1077 = vmul.f32 %v1018, 1.442695
        %v1078 = vpow.pop %v1077
        %v1079 = vmul.f32 %v1019, 1.442695
        %v1080 = vpow.pop %v1079
        %v1081 = vmul.f32 %v1020, 1.442695
        %v1082 = vpow.pop %v1081
        %v1083 = vmul.f32 %v1021, 1.442695
        %v1084 = vpow.pop %v1083
        %v1085 = vmul.f32 %v1022, 1.442695
        %v1086 = vpow.pop %v1085
        %v1087 = vadd.f32 %v1024, 1.0
        %v1088 = vadd.f32 %v1026, 1.0
        %v1089 = vadd.f32 %v1028, 1.0
        %v1090 = vadd.f32 %v1030, 1.0
        %v1091 = vadd.f32 %v1032, 1.0
        %v1092 = vadd.f32 %v1034, 1.0
        %v1093 = vadd.f32 %v1036, 1.0
        %v1094 = vadd.f32 %v1038, 1.0
        %v1095 = vadd.f32 %v1040, 1.0
        %v1096 = vadd.f32 %v1042, 1.0
        %v1097 = vadd.f32 %v1044, 1.0
        %v1098 = vadd.f32 %v1046, 1.0
        %v1099 = vadd.f32 %v1048, 1.0
        %v1100 = vadd.f32 %v1050, 1.0
        %v1101 = vadd.f32 %v1052, 1.0
        %v1102 = vadd.f32 %v1054, 1.0
        %v1103 = vadd.f32 %v1056, 1.0
        %v1104 = vadd.f32 %v1058, 1.0
        %v1105 = vadd.f32 %v1060, 1.0
        %v1106 = vadd.f32 %v1062, 1.0
        %v1107 = vadd.f32 %v1064, 1.0
        %v1108 = vadd.f32 %v1066, 1.0
        %v1109 = vadd.f32 %v1068, 1.0
        %v1110 = vadd.f32 %v1070, 1.0
        %v1111 = vadd.f32 %v1072, 1.0
        %v1112 = vadd.f32 %v1074, 1.0
        %v1113 = vadd.f32 %v1076, 1.0
        %v1114 = vadd.f32 %v1078, 1.0
        %v1115 = vadd.f32 %v1080, 1.0
        %v1116 = vadd.f32 %v1082, 1.0
        %v1117 = vadd.f32 %v1084, 1.0
        %v1118 = vadd.f32 %v1086, 1.0
        %v1119 = vrcp.pop %v1087
        %v1120 = vrcp.pop %v1088
        %v1121 = vrcp.pop %v1089
        %v1122 = vrcp.pop %v1090
        %v1123 = vrcp.pop %v1091
        %v1124 = vrcp.pop %v1092
        %v1125 = vrcp.pop %v1093
        %v1126 = vrcp.pop %v1094
        %v1127 = vrcp.pop %v1095
        %v1128 = vrcp.pop %v1096
        %v1129 = vrcp.pop %v1097
        %v1130 = vrcp.pop %v1098
        %v1131 = vrcp.pop %v1099
        %v1132 = vrcp.pop %v1100
        %v1133 = vrcp.pop %v1101
        %v1134 = vrcp.pop %v1102
        %v1135 = vrcp.pop %v1103
        %v1136 = vrcp.pop %v1104
        %v1137 = vrcp.pop %v1105
        %v1138 = vrcp.pop %v1106
        %v1139 = vrcp.pop %v1107
        %v1140 = vrcp.pop %v1108
        %v1141 = vrcp.pop %v1109
        %v1142 = vrcp.pop %v1110
        %v1143 = vrcp.pop %v1111
        %v1144 = vrcp.pop %v1112
        %v1145 = vrcp.pop %v1113
        %v1146 = vrcp.pop %v1114
        %v1147 = vrcp.pop %v1115
        %v1148 = vrcp.pop %v1116
        %v1149 = vrcp.pop %v1117
        %v1150 = vrcp.pop %v1118
        %1183 = vrot.lane.b32.xlu0 %v1119, 32
        %v1184 = vpop.permute.xlu0 %1183
        %1185 = vrot.lane.b32.xlu0 %v1120, 32
        %v1186 = vpop.permute.xlu0 %1185
        %1187 = vrot.lane.b32.xlu0 %v1121, 32
        %v1188 = vpop.permute.xlu0 %1187
        %1189 = vrot.lane.b32.xlu0 %v1122, 32
        %v1190 = vpop.permute.xlu0 %1189
        %1191 = vrot.lane.b32.xlu0 %v1123, 32
        %v1192 = vpop.permute.xlu0 %1191
        %1193 = vrot.lane.b32.xlu0 %v1124, 32
        %v1194 = vpop.permute.xlu0 %1193
        %1195 = vrot.lane.b32.xlu0 %v1125, 32
        %v1196 = vpop.permute.xlu0 %1195
        %1197 = vrot.lane.b32.xlu0 %v1126, 32
        %v1198 = vpop.permute.xlu0 %1197
        %1199 = vrot.lane.b32.xlu0 %v1127, 32
        %v1200 = vpop.permute.xlu0 %1199
        %1201 = vrot.lane.b32.xlu0 %v1128, 32
        %v1202 = vpop.permute.xlu0 %1201
        %1203 = vrot.lane.b32.xlu0 %v1129, 32
        %v1204 = vpop.permute.xlu0 %1203
        %1205 = vrot.lane.b32.xlu0 %v1130, 32
        %v1206 = vpop.permute.xlu0 %1205
        %1207 = vrot.lane.b32.xlu0 %v1131, 32
        %v1208 = vpop.permute.xlu0 %1207
        %1209 = vrot.lane.b32.xlu0 %v1132, 32
        %v1210 = vpop.permute.xlu0 %1209
        %1211 = vrot.lane.b32.xlu0 %v1133, 32
        %v1212 = vpop.permute.xlu0 %1211
        %1213 = vrot.lane.b32.xlu0 %v1134, 32
        %v1214 = vpop.permute.xlu0 %1213
        %1215 = vrot.lane.b32.xlu0 %v1135, 32
        %v1216 = vpop.permute.xlu0 %1215
        %1217 = vrot.lane.b32.xlu0 %v1136, 32
        %v1218 = vpop.permute.xlu0 %1217
        %1219 = vrot.lane.b32.xlu0 %v1137, 32
        %v1220 = vpop.permute.xlu0 %1219
        %1221 = vrot.lane.b32.xlu0 %v1138, 32
        %v1222 = vpop.permute.xlu0 %1221
        %1223 = vrot.lane.b32.xlu0 %v1139, 32
        %v1224 = vpop.permute.xlu0 %1223
        %1225 = vrot.lane.b32.xlu0 %v1140, 32
        %v1226 = vpop.permute.xlu0 %1225
        %1227 = vrot.lane.b32.xlu0 %v1141, 32
        %v1228 = vpop.permute.xlu0 %1227
        %1229 = vrot.lane.b32.xlu0 %v1142, 32
        %v1230 = vpop.permute.xlu0 %1229
        %1231 = vrot.lane.b32.xlu0 %v1143, 32
        %v1232 = vpop.permute.xlu0 %1231
        %1233 = vrot.lane.b32.xlu0 %v1144, 32
        %v1234 = vpop.permute.xlu0 %1233
        %1235 = vrot.lane.b32.xlu0 %v1145, 32
        %v1236 = vpop.permute.xlu0 %1235
        %1237 = vrot.lane.b32.xlu0 %v1146, 32
        %v1238 = vpop.permute.xlu0 %1237
        %1239 = vrot.lane.b32.xlu0 %v1147, 32
        %v1240 = vpop.permute.xlu0 %1239
        %1241 = vrot.lane.b32.xlu0 %v1148, 32
        %v1242 = vpop.permute.xlu0 %1241
        %1243 = vrot.lane.b32.xlu0 %v1149, 32
        %v1244 = vpop.permute.xlu0 %1243
        %1245 = vrot.lane.b32.xlu0 %v1150, 32
        %v1246 = vpop.permute.xlu0 %1245
        %vm1279 = vcmask 7168
        %1280 = vst.msk [vmem:[%s218] sm:$0xff] %vm1279, %v1184
        %1281 = vst.msk [vmem:[%s218 + $0x8] sm:$0xff] %vm1279, %v1186
        %1282 = vst.msk [vmem:[%s218 + $0x10] sm:$0xff] %vm1279, %v1188
        %1283 = vst.msk [vmem:[%s218 + $0x18] sm:$0xff] %vm1279, %v1190
        %1284 = vst.msk [vmem:[%s218 + $0x20] sm:$0xff] %vm1279, %v1192
        %1285 = vst.msk [vmem:[%s218 + $0x28] sm:$0xff] %vm1279, %v1194
        %1286 = vst.msk [vmem:[%s218 + $0x30] sm:$0xff] %vm1279, %v1196
        %1287 = vst.msk [vmem:[%s218 + $0x38] sm:$0xff] %vm1279, %v1198
        %1288 = vst.msk [vmem:[%s218 + $0x40] sm:$0xff] %vm1279, %v1200
        %1289 = vst.msk [vmem:[%s218 + $0x48] sm:$0xff] %vm1279, %v1202
        %1290 = vst.msk [vmem:[%s218 + $0x50] sm:$0xff] %vm1279, %v1204
        %1291 = vst.msk [vmem:[%s218 + $0x58] sm:$0xff] %vm1279, %v1206
        %1292 = vst.msk [vmem:[%s218 + $0x60] sm:$0xff] %vm1279, %v1208
        %1293 = vst.msk [vmem:[%s218 + $0x68] sm:$0xff] %vm1279, %v1210
        %1294 = vst.msk [vmem:[%s218 + $0x70] sm:$0xff] %vm1279, %v1212
        %1295 = vst.msk [vmem:[%s218 + $0x78] sm:$0xff] %vm1279, %v1214
        %1296 = vst.msk [vmem:[%s218 + $0x80] sm:$0xff] %vm1279, %v1216
        %1297 = vst.msk [vmem:[%s218 + $0x88] sm:$0xff] %vm1279, %v1218
        %1298 = vst.msk [vmem:[%s218 + $0x90] sm:$0xff] %vm1279, %v1220
        %1299 = vst.msk [vmem:[%s218 + $0x98] sm:$0xff] %vm1279, %v1222
        %1300 = vst.msk [vmem:[%s218 + $0xa0] sm:$0xff] %vm1279, %v1224
        %1301 = vst.msk [vmem:[%s218 + $0xa8] sm:$0xff] %vm1279, %v1226
        %1302 = vst.msk [vmem:[%s218 + $0xb0] sm:$0xff] %vm1279, %v1228
        %1303 = vst.msk [vmem:[%s218 + $0xb8] sm:$0xff] %vm1279, %v1230
        %1304 = vst.msk [vmem:[%s218 + $0xc0] sm:$0xff] %vm1279, %v1232
        %1305 = vst.msk [vmem:[%s218 + $0xc8] sm:$0xff] %vm1279, %v1234
        %1306 = vst.msk [vmem:[%s218 + $0xd0] sm:$0xff] %vm1279, %v1236
        %1307 = vst.msk [vmem:[%s218 + $0xd8] sm:$0xff] %vm1279, %v1238
        %1308 = vst.msk [vmem:[%s218 + $0xe0] sm:$0xff] %vm1279, %v1240
        %1309 = vst.msk [vmem:[%s218 + $0xe8] sm:$0xff] %vm1279, %v1242
        %1310 = vst.msk [vmem:[%s218 + $0xf0] sm:$0xff] %vm1279, %v1244
        %1311 = vst.msk [vmem:[%s218 + $0xf8] sm:$0xff] %vm1279, %v1246
        %s1312 = smul.u32 32, %s18
        %p1313 = scmp.lt.s32.totalorder %s1312, 63
        %s1314 = scalar_select %p1313, %s1312, 63
        %s1315 = smul.addr %s1314, 8
        %s1316 = scalar_lea.vmem %s4, %s1315
        // Predicated region
        $region41: #{tpu_custom_call.1} parent=35 // pred_check
          %p1317 = pneg %p125
        $region42: #{tpu_custom_call.1} parent=35 // pred_check_branch
          %1319 = sbr.rel (%p1317) target = $region44
        $region43: #{tpu_custom_call.1} parent=35 // pred_region
          %s1320 = smul.u32 32, %s18
        $region44: #{tpu_custom_call.1} parent=35 // pred_fallthru
          _
      $region36: #{tpu_custom_call.1} parent=5 // pred_fallthru
        _
      %p1321 = scmp.le.s32.totalorder 2, %s13
      // Predicated region
      $region45: #{tpu_custom_call.1} parent=5 // pred_check
        %p1322 = pneg %p1321
      $region46: #{tpu_custom_call.1} parent=5 // pred_check_branch
        %1324 = sbr.rel (%p1322) target = $region48
      $region47: #{tpu_custom_call.1} parent=5 // pred_region
        %s1325 = ssub.s32 %s13, 2
        // Predicated region
        $region49: #{tpu_custom_call.1} parent=47 // pred_check
          %p1326 = pneg %p131
        $region50: #{tpu_custom_call.1} parent=47 // pred_check_branch
          %1328 = sbr.rel (%p1326) target = $region52
        $region51: #{tpu_custom_call.1} parent=47 // pred_region
          %s1329 = smul.u32 32, %s19
          %p1330 = scmp.lt.s32.totalorder %s1329, 63
          %s1331 = scalar_select %p1330, %s1329, 63
          %s1332 = smul.addr %s1331, 8
          %s1333 = scalar_lea.vmem %s4, %s1332
        $region52: #{tpu_custom_call.1} parent=47 // pred_fallthru
          _
      $region48: #{tpu_custom_call.1} parent=5 // pred_fallthru
        _
    $region6: #{tpu_custom_call.1} parent=1 // loop_footer
      %s17 = sadd.s32 1, %s13
    $region7: #{tpu_custom_call.1} parent=1 // loop_footer_branch
      %12 = sbr.rel target = $region3
    $region8: #{tpu_custom_call.1} parent=1 // loop_exit
      _
    %1334 = vsyncpa [#allocation3], 1
    %s1335 = scalar_lea.sflag [#allocation3], 1
    %1336 = vsyncpa %s1335, 1

</llo_original>
